<compile_context>
chip_gen: v6e
topology: v6e:2x2x1
jax: 0.10.0
libtpu: 0.0.40
codegen_flags: <defaults>
</compile_context>

<pallas_src>
import functools

import jax
import jax.numpy as jnp
import numpy as np
from jax.experimental import pallas as pl
from jax.experimental.pallas import tpu as pltpu


def _make_tap_masks_np(H, W):
    """(9, H*W) f32 masks: mask[dy*3+dx, h*W+w] == 1 iff (h+dy-1, w+dx-1) is inside the image."""
    hh, ww = np.meshgrid(np.arange(H), np.arange(W), indexing="ij")
    masks = np.zeros((9, H * W), np.float32)
    for dy in range(3):
        for dx in range(3):
            valid = ((hh + dy - 1 >= 0) & (hh + dy - 1 < H) &
                     (ww + dx - 1 >= 0) & (ww + dx - 1 < W))
            masks[dy * 3 + dx] = valid.reshape(-1).astype(np.float32)
    return masks


def resblock_kernel(x_ref, mask_ref, w1_ref, b1_ref, w2_ref, b2_ref, out_ref,
                    *, W, HW, B_BLK):
    # x_ref    : (B_BLK, Cin, H*W)   NCHW images, spatial flattened on the lane axis
    # mask_ref : (9, B_BLK*H*W)      border masks, tiled per image (f32)
    # w1_ref   : (Cmid, 9*Cin)       3x3 conv weights, columns ordered (dy, dx, cin), bf16
    # b1_ref   : (Cmid, 1)           f32
    # w2_ref   : (Cin, Cmid)         1x1 conv weights, bf16
    # b2_ref   : (Cin, 1)            f32
    # out_ref  : (B_BLK, Cin, H*W)
    L = B_BLK * HW

    # All B_BLK images side by side on the lane axis, channels on sublanes: (Cin, B_BLK*HW).
    if B_BLK > 1:
        x_full = jnp.concatenate([x_ref[b] for b in range(B_BLK)], axis=1)
    else:
        x_full = x_ref[0]
    h = jnp.maximum(x_full, 0.0)                       # first ReLU (f32, VPU)

    # im2col as a VALUE: 9 full-slab lane rolls (XLU) + border masks (VPU, f32),
    # cast to bf16 only at the MXU boundary.  The border masks also zero every lane where
    # the concatenated roll would cross an image seam or wrap, so this is exact zero-padding.
    taps = []
    for dy in range(3):
        for dx in range(3):
            t = dy * 3 + dx
            shift = (dy - 1) * W + (dx - 1)            # flattened source offset of this tap
            src = h if shift == 0 else pltpu.roll(h, shift=(-shift) % L, axis=1)
            if t == 4:                                 # center tap: mask is all ones
                tap = src
            else:
                tap = src * mask_ref[t:t + 1, :]
            taps.append(tap.astype(jnp.bfloat16))
    slab = jnp.concatenate(taps, axis=0)               # (9*Cin, B_BLK*HW) bf16, built in vregs

    # 3x3 conv as ONE MXU matmul: (Cmid, 9*Cin) @ (9*Cin, B_BLK*HW), f32 accumulate.
    # Bias kept as an explicit f32 broadcast add (exact), then second ReLU.
    mid = jnp.dot(w1_ref[...], slab, preferred_element_type=jnp.float32) + b1_ref[...]
    mid = jnp.maximum(mid, 0.0)

    # 1x1 conv: (Cin, Cmid) @ (Cmid, B_BLK*HW); bias + residual in f32 on the VPU.
    out = jnp.dot(w2_ref[...], mid.astype(jnp.bfloat16),
                  preferred_element_type=jnp.float32)
    out = out + b2_ref[...] + x_full

    # Store each image back in NCHW order; lane offsets b*HW are multiples of 128 (aligned).
    for b in range(B_BLK):
        out_ref[b] = out[:, b * HW:(b + 1) * HW].astype(out_ref.dtype)


def _pick_batch_block(N, max_blk=8):
    for b in range(min(N, max_blk), 0, -1):
        if N % b == 0:
            return b
    return 1


def resblock_forward(x_nchw, w1, b1, w2, b2):
    """x_nchw: (N, Cin, H, W) f32.  Weights in PyTorch layout:
    w1 (Cmid, Cin, 3, 3), b1 (Cmid,), w2 (Cin, Cmid, 1, 1), b2 (Cin,)."""
    N, Cin, H, W = x_nchw.shape
    Cmid = w1.shape[0]
    HW = H * W
    # TODO(synk): at real ResBlock shapes add a row-tile grid axis with a 1-row halo and cap
    # B_BLK by per-generation VMEM (v7x 64 MiB vs v5e/v6e 128 MiB).
    B_BLK = _pick_batch_block(N)
    L = B_BLK * HW

    x_flat = x_nchw.reshape(N, Cin, HW)                      # free reshape, stays NCHW-ordered
    masks = jnp.asarray(np.tile(_make_tap_masks_np(H, W), (1, B_BLK)))   # (9, B_BLK*HW) f32
    # (Cmid, Cin, 3, 3) -> (Cmid, 3, 3, Cin) -> (Cmid, 9*Cin): columns ordered (dy, dx, cin)
    w1_mat = jnp.transpose(w1, (0, 2, 3, 1)).reshape(Cmid, 9 * Cin).astype(jnp.bfloat16)
    w2_mat = w2.reshape(Cin, Cmid).astype(jnp.bfloat16)
    b1_col = b1.reshape(Cmid, 1).astype(jnp.float32)
    b2_col = b2.reshape(Cin, 1).astype(jnp.float32)

    out_flat = pl.pallas_call(
        functools.partial(resblock_kernel, W=W, HW=HW, B_BLK=B_BLK),
        out_shape=jax.ShapeDtypeStruct((N, Cin, HW), jnp.float32),
        grid_spec=pltpu.PrefetchScalarGridSpec(
            num_scalar_prefetch=0,
            grid=(N // B_BLK,),                              # batch-blocked grid
            in_specs=[
                pl.BlockSpec((B_BLK, Cin, HW), lambda g: (g, 0, 0)),
                pl.BlockSpec((9, L), lambda g: (0, 0)),
                pl.BlockSpec((Cmid, 9 * Cin), lambda g: (0, 0)),
                pl.BlockSpec((Cmid, 1), lambda g: (0, 0)),
                pl.BlockSpec((Cin, Cmid), lambda g: (0, 0)),
                pl.BlockSpec((Cin, 1), lambda g: (0, 0)),
            ],
            out_specs=pl.BlockSpec((B_BLK, Cin, HW), lambda g: (g, 0, 0)),
        ),
        compiler_params=pltpu.CompilerParams(
            dimension_semantics=("parallel",),               # shards batch blocks across TCs
            vmem_limit_bytes=32 * 1024 * 1024),              # explicit; resize when blocks grow
    )(x_flat, masks, w1_mat, b1_col, w2_mat, b2_col)

    return out_flat.reshape(N, Cin, H, W)


def _reference(x, w1, b1, w2, b2):
    # Independent pure-JAX/XLA reference with the same forward semantics.
    h = jnp.maximum(x, 0.0)
    y = jax.lax.conv_general_dilated(
        h, w1, window_strides=(1, 1), padding=((1, 1), (1, 1)),
        dimension_numbers=("NCHW", "OIHW", "NCHW"),
        precision=jax.lax.Precision.HIGHEST)
    y = y + b1[None, :, None, None]
    y = jnp.maximum(y, 0.0)
    y = jax.lax.conv_general_dilated(
        y, w2, window_strides=(1, 1), padding=((0, 0), (0, 0)),
        dimension_numbers=("NCHW", "OIHW", "NCHW"),
        precision=jax.lax.Precision.HIGHEST)
    y = y + b2[None, :, None, None]
    return y + x


if __name__ == "__main__":
    N, Cin, Cmid, H, W = 2, 4, 8, 16, 16

    key = jax.random.PRNGKey(0)
    kx, kw1, kb1, kw2, kb2 = jax.random.split(key, 5)

    def q(a):  # snap to bf16-representable f32 so the bf16 MXU path matches the f32 reference
        return a.astype(jnp.bfloat16).astype(jnp.float32)

    x = q(jax.random.normal(kx, (N, Cin, H, W), dtype=jnp.float32))
    w1 = q(0.1 * jax.random.normal(kw1, (Cmid, Cin, 3, 3), dtype=jnp.float32))   # OIHW
    b1 = q(0.1 * jax.random.normal(kb1, (Cmid,), dtype=jnp.float32))
    w2 = q(0.1 * jax.random.normal(kw2, (Cin, Cmid, 1, 1), dtype=jnp.float32))   # OIHW
    b2 = q(0.1 * jax.random.normal(kb2, (Cin,), dtype=jnp.float32))

    out = resblock_forward(x, w1, b1, w2, b2)
    jax.block_until_ready(out)

    ref = _reference(x, w1, b1, w2, b2)
    assert out.shape == (N, Cin, H, W)
    assert jnp.allclose(out, ref, rtol=1e-3, atol=1e-3), float(jnp.max(jnp.abs(out - ref)))

    print("KERNEL_OK")
</pallas_src>

<mosaic_0001>
module attributes {stable_mosaic.version = 11 : i64} {
  func.func @resblock_kernel(%arg0: i32, %arg1: memref<2x4x256xf32, #tpu.memory_space<vmem>>, %arg2: memref<9x512xf32, #tpu.memory_space<vmem>>, %arg3: memref<8x36xbf16, #tpu.memory_space<vmem>>, %arg4: memref<8x1xf32, #tpu.memory_space<vmem>>, %arg5: memref<4x8xbf16, #tpu.memory_space<vmem>>, %arg6: memref<4x1xf32, #tpu.memory_space<vmem>>, %arg7: memref<2x4x256xf32, #tpu.memory_space<vmem>>) attributes {dimension_semantics = [#tpu.dimension_semantics<parallel>], iteration_bounds = array<i64: 1>, scalar_prefetch = 0 : i64, scratch_operands = 0 : i64, tpu.core_type = #tpu.core_type<tc>, window_params = [{transform_indices = @transform_0, window_bounds = array<i64: 2, 4, 256>}, {pipeline_mode = #tpu.pipeline_mode<synchronous>, transform_indices = @transform_1, window_bounds = array<i64: 9, 512>}, {pipeline_mode = #tpu.pipeline_mode<synchronous>, transform_indices = @transform_2, window_bounds = array<i64: 8, 36>}, {pipeline_mode = #tpu.pipeline_mode<synchronous>, transform_indices = @transform_3, window_bounds = array<i64: 8, 1>}, {pipeline_mode = #tpu.pipeline_mode<synchronous>, transform_indices = @transform_4, window_bounds = array<i64: 4, 8>}, {pipeline_mode = #tpu.pipeline_mode<synchronous>, transform_indices = @transform_5, window_bounds = array<i64: 4, 1>}, {transform_indices = @transform_6, window_bounds = array<i64: 2, 4, 256>}]} {
    %c0 = arith.constant 0 : index
    %c0_0 = arith.constant 0 : index
    %c0_1 = arith.constant 0 : index
    %0 = vector.load %arg1[%c0, %c0_0, %c0_1] : memref<2x4x256xf32, #tpu.memory_space<vmem>>, vector<1x4x256xf32>
    %1 = vector.shape_cast %0 : vector<1x4x256xf32> to vector<4x256xf32>
    %c1 = arith.constant 1 : index
    %c0_2 = arith.constant 0 : index
    %c0_3 = arith.constant 0 : index
    %2 = vector.load %arg1[%c1, %c0_2, %c0_3] : memref<2x4x256xf32, #tpu.memory_space<vmem>>, vector<1x4x256xf32>
    %3 = vector.shape_cast %2 : vector<1x4x256xf32> to vector<4x256xf32>
    %4 = tpu.concatenate %1, %3 in 1 : vector<4x256xf32>, vector<4x256xf32> -> vector<4x512xf32>
    %cst = arith.constant 0.000000e+00 : f32
    %5 = vector.broadcast %cst : f32 to vector<4x512xf32>
    %6 = arith.maximumf %4, %5 : vector<4x512xf32>
    %c17_i32 = arith.constant 17 : i32
    %7 = tpu.dynamic_rotate %6 by %c17_i32 dim 1 : vector<4x512xf32>, i32 -> vector<4x512xf32>
    %c0_4 = arith.constant 0 : index
    %c0_5 = arith.constant 0 : index
    %8 = vector.load %arg2[%c0_4, %c0_5] : memref<9x512xf32, #tpu.memory_space<vmem>>, vector<1x512xf32>
    %9 = vector.broadcast %8 : vector<1x512xf32> to vector<4x512xf32>
    %10 = arith.mulf %7, %9 : vector<4x512xf32>
    %11 = arith.truncf %10 : vector<4x512xf32> to vector<4x512xbf16>
    %c16_i32 = arith.constant 16 : i32
    %12 = tpu.dynamic_rotate %6 by %c16_i32 dim 1 : vector<4x512xf32>, i32 -> vector<4x512xf32>
    %c1_6 = arith.constant 1 : index
    %c0_7 = arith.constant 0 : index
    %13 = vector.load %arg2[%c1_6, %c0_7] : memref<9x512xf32, #tpu.memory_space<vmem>>, vector<1x512xf32>
    %14 = vector.broadcast %13 : vector<1x512xf32> to vector<4x512xf32>
    %15 = arith.mulf %12, %14 : vector<4x512xf32>
    %16 = arith.truncf %15 : vector<4x512xf32> to vector<4x512xbf16>
    %c15_i32 = arith.constant 15 : i32
    %17 = tpu.dynamic_rotate %6 by %c15_i32 dim 1 : vector<4x512xf32>, i32 -> vector<4x512xf32>
    %c2 = arith.constant 2 : index
    %c0_8 = arith.constant 0 : index
    %18 = vector.load %arg2[%c2, %c0_8] : memref<9x512xf32, #tpu.memory_space<vmem>>, vector<1x512xf32>
    %19 = vector.broadcast %18 : vector<1x512xf32> to vector<4x512xf32>
    %20 = arith.mulf %17, %19 : vector<4x512xf32>
    %21 = arith.truncf %20 : vector<4x512xf32> to vector<4x512xbf16>
    %c1_i32 = arith.constant 1 : i32
    %22 = tpu.dynamic_rotate %6 by %c1_i32 dim 1 : vector<4x512xf32>, i32 -> vector<4x512xf32>
    %c3 = arith.constant 3 : index
    %c0_9 = arith.constant 0 : index
    %23 = vector.load %arg2[%c3, %c0_9] : memref<9x512xf32, #tpu.memory_space<vmem>>, vector<1x512xf32>
    %24 = vector.broadcast %23 : vector<1x512xf32> to vector<4x512xf32>
    %25 = arith.mulf %22, %24 : vector<4x512xf32>
    %26 = arith.truncf %25 : vector<4x512xf32> to vector<4x512xbf16>
    %27 = arith.truncf %6 : vector<4x512xf32> to vector<4x512xbf16>
    %c511_i32 = arith.constant 511 : i32
    %28 = tpu.dynamic_rotate %6 by %c511_i32 dim 1 : vector<4x512xf32>, i32 -> vector<4x512xf32>
    %c5 = arith.constant 5 : index
    %c0_10 = arith.constant 0 : index
    %29 = vector.load %arg2[%c5, %c0_10] : memref<9x512xf32, #tpu.memory_space<vmem>>, vector<1x512xf32>
    %30 = vector.broadcast %29 : vector<1x512xf32> to vector<4x512xf32>
    %31 = arith.mulf %28, %30 : vector<4x512xf32>
    %32 = arith.truncf %31 : vector<4x512xf32> to vector<4x512xbf16>
    %c497_i32 = arith.constant 497 : i32
    %33 = tpu.dynamic_rotate %6 by %c497_i32 dim 1 : vector<4x512xf32>, i32 -> vector<4x512xf32>
    %c6 = arith.constant 6 : index
    %c0_11 = arith.constant 0 : index
    %34 = vector.load %arg2[%c6, %c0_11] : memref<9x512xf32, #tpu.memory_space<vmem>>, vector<1x512xf32>
    %35 = vector.broadcast %34 : vector<1x512xf32> to vector<4x512xf32>
    %36 = arith.mulf %33, %35 : vector<4x512xf32>
    %37 = arith.truncf %36 : vector<4x512xf32> to vector<4x512xbf16>
    %c496_i32 = arith.constant 496 : i32
    %38 = tpu.dynamic_rotate %6 by %c496_i32 dim 1 : vector<4x512xf32>, i32 -> vector<4x512xf32>
    %c7 = arith.constant 7 : index
    %c0_12 = arith.constant 0 : index
    %39 = vector.load %arg2[%c7, %c0_12] : memref<9x512xf32, #tpu.memory_space<vmem>>, vector<1x512xf32>
    %40 = vector.broadcast %39 : vector<1x512xf32> to vector<4x512xf32>
    %41 = arith.mulf %38, %40 : vector<4x512xf32>
    %42 = arith.truncf %41 : vector<4x512xf32> to vector<4x512xbf16>
    %c495_i32 = arith.constant 495 : i32
    %43 = tpu.dynamic_rotate %6 by %c495_i32 dim 1 : vector<4x512xf32>, i32 -> vector<4x512xf32>
    %c8 = arith.constant 8 : index
    %c0_13 = arith.constant 0 : index
    %44 = vector.load %arg2[%c8, %c0_13] : memref<9x512xf32, #tpu.memory_space<vmem>>, vector<1x512xf32>
    %45 = vector.broadcast %44 : vector<1x512xf32> to vector<4x512xf32>
    %46 = arith.mulf %43, %45 : vector<4x512xf32>
    %47 = arith.truncf %46 : vector<4x512xf32> to vector<4x512xbf16>
    %48 = tpu.concatenate %11, %16, %21, %26, %27, %32, %37, %42, %47 in 0 : vector<4x512xbf16>, vector<4x512xbf16>, vector<4x512xbf16>, vector<4x512xbf16>, vector<4x512xbf16>, vector<4x512xbf16>, vector<4x512xbf16>, vector<4x512xbf16>, vector<4x512xbf16> -> vector<36x512xbf16>
    %c0_14 = arith.constant 0 : index
    %c0_15 = arith.constant 0 : index
    %49 = vector.load %arg3[%c0_14, %c0_15] : memref<8x36xbf16, #tpu.memory_space<vmem>>, vector<8x36xbf16>
    %cst_16 = arith.constant dense<0.000000e+00> : vector<8x512xf32>
    %50 = tpu.matmul %49, %48, %cst_16 {dimension_numbers = #tpu.dot_dimension_numbers<[1], [0], [0], [1], [0, 0, 1, 1], [], []>} : vector<8x36xbf16>, vector<36x512xbf16>, vector<8x512xf32> -> vector<8x512xf32>
    %c0_17 = arith.constant 0 : index
    %c0_18 = arith.constant 0 : index
    %51 = vector.load %arg4[%c0_17, %c0_18] : memref<8x1xf32, #tpu.memory_space<vmem>>, vector<8x1xf32>
    %52 = vector.broadcast %51 : vector<8x1xf32> to vector<8x512xf32>
    %53 = arith.addf %50, %52 : vector<8x512xf32>
    %cst_19 = arith.constant 0.000000e+00 : f32
    %54 = vector.broadcast %cst_19 : f32 to vector<8x512xf32>
    %55 = arith.maximumf %53, %54 : vector<8x512xf32>
    %c0_20 = arith.constant 0 : index
    %c0_21 = arith.constant 0 : index
    %56 = vector.load %arg5[%c0_20, %c0_21] : memref<4x8xbf16, #tpu.memory_space<vmem>>, vector<4x8xbf16>
    %57 = arith.truncf %55 : vector<8x512xf32> to vector<8x512xbf16>
    %cst_22 = arith.constant dense<0.000000e+00> : vector<4x512xf32>
    %58 = tpu.matmul %56, %57, %cst_22 {dimension_numbers = #tpu.dot_dimension_numbers<[1], [0], [0], [1], [0, 0, 1, 1], [], []>} : vector<4x8xbf16>, vector<8x512xbf16>, vector<4x512xf32> -> vector<4x512xf32>
    %c0_23 = arith.constant 0 : index
    %c0_24 = arith.constant 0 : index
    %59 = vector.load %arg6[%c0_23, %c0_24] : memref<4x1xf32, #tpu.memory_space<vmem>>, vector<4x1xf32>
    %60 = vector.broadcast %59 : vector<4x1xf32> to vector<4x512xf32>
    %61 = arith.addf %58, %60 : vector<4x512xf32>
    %62 = arith.addf %61, %4 : vector<4x512xf32>
    %63 = vector.extract_strided_slice %62 {offsets = [0, 0], sizes = [4, 256], strides = [1, 1]} : vector<4x512xf32> to vector<4x256xf32>
    %c0_25 = arith.constant 0 : index
    %c0_26 = arith.constant 0 : index
    %c0_27 = arith.constant 0 : index
    %64 = vector.load %arg7[%c0_25, %c0_26, %c0_27] : memref<2x4x256xf32, #tpu.memory_space<vmem>>, vector<1x4x256xf32>
    %65 = vector.shape_cast %64 : vector<1x4x256xf32> to vector<4x256xf32>
    %66 = vector.shape_cast %63 : vector<4x256xf32> to vector<1x4x256xf32>
    tpu.vector_store %arg7[%c0_25, %c0_26, %c0_27], %66 {strides = array<i32>} : memref<2x4x256xf32, #tpu.memory_space<vmem>>, vector<1x4x256xf32>,
    %67 = vector.extract_strided_slice %62 {offsets = [0, 256], sizes = [4, 256], strides = [1, 1]} : vector<4x512xf32> to vector<4x256xf32>
    %c1_28 = arith.constant 1 : index
    %c0_29 = arith.constant 0 : index
    %c0_30 = arith.constant 0 : index
    %68 = vector.load %arg7[%c1_28, %c0_29, %c0_30] : memref<2x4x256xf32, #tpu.memory_space<vmem>>, vector<1x4x256xf32>
    %69 = vector.shape_cast %68 : vector<1x4x256xf32> to vector<4x256xf32>
    %70 = vector.shape_cast %67 : vector<4x256xf32> to vector<1x4x256xf32>
    tpu.vector_store %arg7[%c1_28, %c0_29, %c0_30], %70 {strides = array<i32>} : memref<2x4x256xf32, #tpu.memory_space<vmem>>, vector<1x4x256xf32>,
    return
  }
  func.func @transform_0(%arg0: i32) -> (i32, i32, i32) {
    %c0_i32 = arith.constant 0 : i32
    %c0_i32_0 = arith.constant 0 : i32
    %c0_i32_1 = arith.constant 0 : i32
    return %arg0, %c0_i32, %c0_i32_0 : i32, i32, i32
  }
  func.func @transform_1(%arg0: i32) -> (i32, i32) {
    %c0_i32 = arith.constant 0 : i32
    %c0_i32_0 = arith.constant 0 : i32
    %c0_i32_1 = arith.constant 0 : i32
    return %c0_i32, %c0_i32_0 : i32, i32
  }
  func.func @transform_2(%arg0: i32) -> (i32, i32) {
    %c0_i32 = arith.constant 0 : i32
    %c0_i32_0 = arith.constant 0 : i32
    %c0_i32_1 = arith.constant 0 : i32
    return %c0_i32, %c0_i32_0 : i32, i32
  }
  func.func @transform_3(%arg0: i32) -> (i32, i32) {
    %c0_i32 = arith.constant 0 : i32
    %c0_i32_0 = arith.constant 0 : i32
    %c0_i32_1 = arith.constant 0 : i32
    return %c0_i32, %c0_i32_0 : i32, i32
  }
  func.func @transform_4(%arg0: i32) -> (i32, i32) {
    %c0_i32 = arith.constant 0 : i32
    %c0_i32_0 = arith.constant 0 : i32
    %c0_i32_1 = arith.constant 0 : i32
    return %c0_i32, %c0_i32_0 : i32, i32
  }
  func.func @transform_5(%arg0: i32) -> (i32, i32) {
    %c0_i32 = arith.constant 0 : i32
    %c0_i32_0 = arith.constant 0 : i32
    %c0_i32_1 = arith.constant 0 : i32
    return %c0_i32, %c0_i32_0 : i32, i32
  }
  func.func @transform_6(%arg0: i32) -> (i32, i32, i32) {
    %c0_i32 = arith.constant 0 : i32
    %c0_i32_0 = arith.constant 0 : i32
    %c0_i32_1 = arith.constant 0 : i32
    return %arg0, %c0_i32, %c0_i32_0 : i32, i32, i32
  }
}

</mosaic_0001>

<llo_original>
// kernel: tpu_custom_call.1
$region0: #{tpu_custom_call.1}
  #allocation0 [shape = 'u32[]', space=smem, size = 0x4, offset = 0x4, fixed_abs, tag = 'smem constant byte address 0x4 - core index']
  #allocation1 [shape = 'u32[144,128]{1,0:T(1,128)}', space=vmem, size = 0x12000, scoped, tag = 'internal scratch']
  %s0 = inlined_call_operand.hbm [shape: f32[2,4,256], index: 0, kind: input, shape index: {}]
  %s1 = inlined_call_operand.hbm [shape: f32[9,512], index: 1, kind: input, shape index: {}]
  %s2 = inlined_call_operand.vmem [shape: bf16[8,36], index: 2, kind: input, shape index: {}]
  %s3 = inlined_call_operand.vmem [shape: f32[8,1], index: 3, kind: input, shape index: {}]
  %s4 = inlined_call_operand.vmem [shape: bf16[4,8], index: 4, kind: input, shape index: {}]
  %s5 = inlined_call_operand.vmem [shape: f32[4,1], index: 5, kind: input, shape index: {}]
  %s6 = inlined_call_operand.hbm [shape: f32[2,4,256], index: 6, kind: output, shape index: {}]
  %s7 = sld [smem:[#allocation0]]
  $region42: #{tpu_custom_call.1} parent=0
    _
  %s9 = ssub.s32 1, %s7
  %s10 = scalar_select 0, %s9, %s7
  $region1: #{tpu_custom_call.1} parent=0
    #allocation2 [shape = 'u8[8192]{0}', space=vmem, size = 0x2000, scoped, tag = 'input window, operand 0, single buffered']
    #allocation3 [shape = 's32[1]{0}', space=sflag, size = 0x4, scoped, tag = 'scoped memory for tpu_custom_call.1']
    #allocation4 [shape = 's32[1]{0}', space=sflag, size = 0x4, scoped, tag = 'scoped memory for tpu_custom_call.1']
    #allocation5 [shape = 'u8[32768]{0}', space=vmem, size = 0x8000, scoped, tag = 'input window, operand 1, single buffered']
    #allocation6 [shape = 's32[1]{0}', space=sflag, size = 0x4, scoped, tag = 'scoped memory for tpu_custom_call.1']
    #allocation7 [shape = 'u8[8192]{0}', space=vmem, size = 0x2000, scoped, tag = 'output window, operand 0, single buffered']
    %11 = vsyncpa [#allocation3], 0
    %12 = vsyncpa [#allocation6], 0
    %13 = vsyncpa [#allocation4], 0
    // Predicated region
    $region2: #{tpu_custom_call.1} parent=1 // pred_check
      _
    $region3: #{tpu_custom_call.1} parent=1 // pred_check_branch
      %15 = sbr.rel (0) target = $region5
    $region4: #{tpu_custom_call.1} parent=1 // pred_region
      %s17 = ssub.s32 256, 256
      %18 = vsyncadd [#allocation3], %s17
      %s19 = sshll.u32 [#allocation2], 4
      %s20 = int_to_ptr.vmem [resolvable:$true] %s19
      %25 = dma.hbm_to_vmem [thread:$0]  %s0, 256, %s20, [#allocation3], 128, 128, 8
    $region5: #{tpu_custom_call.1} parent=1 // pred_fallthru
      _
    // Predicated region
    $region6: #{tpu_custom_call.1} parent=1 // pred_check
      _
    $region7: #{tpu_custom_call.1} parent=1 // pred_check_branch
      %27 = sbr.rel (0) target = $region9
    $region8: #{tpu_custom_call.1} parent=1 // pred_region
      %s29 = ssub.s32 1024, 1024
      %30 = vsyncadd [#allocation6], %s29
      %s31 = sshll.u32 [#allocation5], 4
      %s32 = int_to_ptr.vmem [resolvable:$true] %s31
      %37 = dma.hbm_to_vmem [thread:$0]  %s1, 1024, %s32, [#allocation6], 512, 512, 32
    $region9: #{tpu_custom_call.1} parent=1 // pred_fallthru
      _
    // Predicated region
    $region10: #{tpu_custom_call.1} parent=1 // pred_check
      _
    $region11: #{tpu_custom_call.1} parent=1 // pred_check_branch
      %39 = sbr.rel (0) target = $region13
    $region12: #{tpu_custom_call.1} parent=1 // pred_region
      _
    $region13: #{tpu_custom_call.1} parent=1 // pred_fallthru
      _
    // Predicated region
    $region14: #{tpu_custom_call.1} parent=1 // pred_check
      _
    $region15: #{tpu_custom_call.1} parent=1 // pred_check_branch
      %41 = sbr.rel (0) target = $region17
    $region16: #{tpu_custom_call.1} parent=1 // pred_region
      _
    $region17: #{tpu_custom_call.1} parent=1 // pred_fallthru
      _
    // Predicated region
    $region18: #{tpu_custom_call.1} parent=1 // pred_check
      _
    $region19: #{tpu_custom_call.1} parent=1 // pred_check_branch
      %43 = sbr.rel (0) target = $region21
    $region20: #{tpu_custom_call.1} parent=1 // pred_region
      _
    $region21: #{tpu_custom_call.1} parent=1 // pred_fallthru
      _
    // Predicated region
    $region22: #{tpu_custom_call.1} parent=1 // pred_check
      _
    $region23: #{tpu_custom_call.1} parent=1 // pred_check_branch
      %45 = sbr.rel (0) target = $region25
    $region24: #{tpu_custom_call.1} parent=1 // pred_region
      _
    $region25: #{tpu_custom_call.1} parent=1 // pred_fallthru
      _
    // Predicated region
    $region26: #{tpu_custom_call.1} parent=1 // pred_check
      _
    $region27: #{tpu_custom_call.1} parent=1 // pred_check_branch
      %47 = sbr.rel (0) target = $region29
    $region28: #{tpu_custom_call.1} parent=1 // pred_region
      %48 = dma.done [#allocation3], 256
    $region29: #{tpu_custom_call.1} parent=1 // pred_fallthru
      _
    // Predicated region
    $region30: #{tpu_custom_call.1} parent=1 // pred_check
      _
    $region31: #{tpu_custom_call.1} parent=1 // pred_check_branch
      %50 = sbr.rel (0) target = $region33
    $region32: #{tpu_custom_call.1} parent=1 // pred_region
      %51 = dma.done [#allocation6], 1024
    $region33: #{tpu_custom_call.1} parent=1 // pred_fallthru
      _
    %v53 = vld [vmem:[#allocation2] sm:$0xff]
    %s54 = scalar_lea.vmem [#allocation2], 8
    %v55 = vld [vmem:[%s54] sm:$0xff]
    %v57 = vcombine.high %v53, %v53
    %v60 = vcombine.high %v55, %v55
    %v62 = vmax.f32 %v53, 0.0
    %v63 = vmax.f32 %v57, 0.0
    %v64 = vmax.f32 %v55, 0.0
    %v65 = vmax.f32 %v60, 0.0
    %66 = vrot.lane.b32.xlu0 %v62, 17
    %v67 = vpop.permute.xlu0 %66
    %68 = vrot.lane.b32.xlu0 %v63, 17
    %v69 = vpop.permute.xlu0 %68
    %70 = vrot.lane.b32.xlu0 %v64, 17
    %v71 = vpop.permute.xlu0 %70
    %72 = vrot.lane.b32.xlu0 %v65, 17
    %v73 = vpop.permute.xlu0 %72
    %v74 = vlaneseq
    %v75 = vand.u32 %v74, 127
    %vm76 = vcmp.lt.s32.totalorder %v75, 17
    %v77 = vsel %vm76, %v71, %v73
    %v78 = vsel %vm76, %v69, %v71
    %v79 = vsel %vm76, %v67, %v69
    %v80 = vsel %vm76, %v73, %v67
    %v81 = vld [vmem:[#allocation5] ss:$8 sm:$0xf]
    %v83 = vlaneseq
    %v84 = vshrl.u32 %v83, 7
    %v85 = vsub.s32 0, %v84
    %v86 = vrot.slane %v81, %v85
    %v87 = vlaneseq
    %v88 = vshrl.u32 %v87, 7
    %v89 = vsub.s32 1, %v88
    %v90 = vrot.slane %v81, %v89
    %v91 = vlaneseq
    %v92 = vshrl.u32 %v91, 7
    %v93 = vsub.s32 2, %v92
    %v94 = vrot.slane %v81, %v93
    %v95 = vlaneseq
    %v96 = vshrl.u32 %v95, 7
    %v97 = vsub.s32 3, %v96
    %v98 = vrot.slane %v81, %v97
    %v103 = vmul.f32 %v80, %v86
    %v104 = vmul.f32 %v79, %v90
    %v105 = vmul.f32 %v78, %v94
    %v106 = vmul.f32 %v77, %v98
    %v107 = vpack.c.bf16 %v103, %v103
    %v108 = vpack.c.bf16 %v104, %v104
    %v109 = vpack.c.bf16 %v105, %v105
    %v110 = vpack.c.bf16 %v106, %v106
    %111 = vrot.lane.b32.xlu0 %v62, 16
    %v112 = vpop.permute.xlu0 %111
    %113 = vrot.lane.b32.xlu0 %v63, 16
    %v114 = vpop.permute.xlu0 %113
    %115 = vrot.lane.b32.xlu0 %v64, 16
    %v116 = vpop.permute.xlu0 %115
    %117 = vrot.lane.b32.xlu0 %v65, 16
    %v118 = vpop.permute.xlu0 %117
    %vm119 = vcmp.lt.s32.totalorder %v75, 16
    %v120 = vsel %vm119, %v116, %v118
    %v121 = vsel %vm119, %v114, %v116
    %v122 = vsel %vm119, %v112, %v114
    %v123 = vsel %vm119, %v118, %v112
    %s124 = scalar_lea.vmem [#allocation5], 1
    %v125 = vld [vmem:[%s124] ss:$8 sm:$0xf]
    %v127 = vlaneseq
    %v128 = vshrl.u32 %v127, 7
    %v129 = vsub.s32 0, %v128
    %v130 = vrot.slane %v125, %v129
    %v131 = vlaneseq
    %v132 = vshrl.u32 %v131, 7
    %v133 = vsub.s32 1, %v132
    %v134 = vrot.slane %v125, %v133
    %v135 = vlaneseq
    %v136 = vshrl.u32 %v135, 7
    %v137 = vsub.s32 2, %v136
    %v138 = vrot.slane %v125, %v137
    %v139 = vlaneseq
    %v140 = vshrl.u32 %v139, 7
    %v141 = vsub.s32 3, %v140
    %v142 = vrot.slane %v125, %v141
    %v147 = vmul.f32 %v123, %v130
    %v148 = vmul.f32 %v122, %v134
    %v149 = vmul.f32 %v121, %v138
    %v150 = vmul.f32 %v120, %v142
    %v151 = vpack.c.bf16 %v147, %v147
    %v152 = vpack.c.bf16 %v148, %v148
    %v153 = vpack.c.bf16 %v149, %v149
    %v154 = vpack.c.bf16 %v150, %v150
    %155 = vrot.lane.b32.xlu0 %v62, 15
    %v156 = vpop.permute.xlu0 %155
    %157 = vrot.lane.b32.xlu0 %v63, 15
    %v158 = vpop.permute.xlu0 %157
    %159 = vrot.lane.b32.xlu0 %v64, 15
    %v160 = vpop.permute.xlu0 %159
    %161 = vrot.lane.b32.xlu0 %v65, 15
    %v162 = vpop.permute.xlu0 %161
    %vm163 = vcmp.lt.s32.totalorder %v75, 15
    %v164 = vsel %vm163, %v160, %v162
    %v165 = vsel %vm163, %v158, %v160
    %v166 = vsel %vm163, %v156, %v158
    %v167 = vsel %vm163, %v162, %v156
    %s168 = scalar_lea.vmem [#allocation5], 2
    %v169 = vld [vmem:[%s168] ss:$8 sm:$0xf]
    %v171 = vlaneseq
    %v172 = vshrl.u32 %v171, 7
    %v173 = vsub.s32 0, %v172
    %v174 = vrot.slane %v169, %v173
    %v175 = vlaneseq
    %v176 = vshrl.u32 %v175, 7
    %v177 = vsub.s32 1, %v176
    %v178 = vrot.slane %v169, %v177
    %v179 = vlaneseq
    %v180 = vshrl.u32 %v179, 7
    %v181 = vsub.s32 2, %v180
    %v182 = vrot.slane %v169, %v181
    %v183 = vlaneseq
    %v184 = vshrl.u32 %v183, 7
    %v185 = vsub.s32 3, %v184
    %v186 = vrot.slane %v169, %v185
    %v191 = vmul.f32 %v167, %v174
    %v192 = vmul.f32 %v166, %v178
    %v193 = vmul.f32 %v165, %v182
    %v194 = vmul.f32 %v164, %v186
    %v195 = vpack.c.bf16 %v191, %v191
    %v196 = vpack.c.bf16 %v192, %v192
    %v197 = vpack.c.bf16 %v193, %v193
    %v198 = vpack.c.bf16 %v194, %v194
    %199 = vrot.lane.b32.xlu0 %v62, 1
    %v200 = vpop.permute.xlu0 %199
    %201 = vrot.lane.b32.xlu0 %v63, 1
    %v202 = vpop.permute.xlu0 %201
    %203 = vrot.lane.b32.xlu0 %v64, 1
    %v204 = vpop.permute.xlu0 %203
    %205 = vrot.lane.b32.xlu0 %v65, 1
    %v206 = vpop.permute.xlu0 %205
    %vm207 = vcmp.lt.s32.totalorder %v75, 1
    %v208 = vsel %vm207, %v204, %v206
    %v209 = vsel %vm207, %v202, %v204
    %v210 = vsel %vm207, %v200, %v202
    %v211 = vsel %vm207, %v206, %v200
    %s212 = scalar_lea.vmem [#allocation5], 3
    %v213 = vld [vmem:[%s212] ss:$8 sm:$0xf]
    %v215 = vlaneseq
    %v216 = vshrl.u32 %v215, 7
    %v217 = vsub.s32 0, %v216
    %v218 = vrot.slane %v213, %v217
    %v219 = vlaneseq
    %v220 = vshrl.u32 %v219, 7
    %v221 = vsub.s32 1, %v220
    %v222 = vrot.slane %v213, %v221
    %v223 = vlaneseq
    %v224 = vshrl.u32 %v223, 7
    %v225 = vsub.s32 2, %v224
    %v226 = vrot.slane %v213, %v225
    %v227 = vlaneseq
    %v228 = vshrl.u32 %v227, 7
    %v229 = vsub.s32 3, %v228
    %v230 = vrot.slane %v213, %v229
    %v235 = vmul.f32 %v211, %v218
    %v236 = vmul.f32 %v210, %v222
    %v237 = vmul.f32 %v209, %v226
    %v238 = vmul.f32 %v208, %v230
    %v239 = vpack.c.bf16 %v235, %v235
    %v240 = vpack.c.bf16 %v236, %v236
    %v241 = vpack.c.bf16 %v237, %v237
    %v242 = vpack.c.bf16 %v238, %v238
    %v243 = vpack.c.bf16 %v62, %v62
    %v244 = vpack.c.bf16 %v63, %v63
    %v245 = vpack.c.bf16 %v64, %v64
    %v246 = vpack.c.bf16 %v65, %v65
    %247 = vrot.lane.b32.xlu0 %v62, 127
    %v248 = vpop.permute.xlu0 %247
    %249 = vrot.lane.b32.xlu0 %v63, 127
    %v250 = vpop.permute.xlu0 %249
    %251 = vrot.lane.b32.xlu0 %v64, 127
    %v252 = vpop.permute.xlu0 %251
    %253 = vrot.lane.b32.xlu0 %v65, 127
    %v254 = vpop.permute.xlu0 %253
    %vm255 = vcmp.lt.s32.totalorder %v75, 127
    %v256 = vsel %vm255, %v252, %v254
    %v257 = vsel %vm255, %v250, %v252
    %v258 = vsel %vm255, %v248, %v250
    %v259 = vsel %vm255, %v254, %v248
    %s260 = scalar_lea.vmem [#allocation5], 5
    %v261 = vld [vmem:[%s260] ss:$8 sm:$0xf]
    %v263 = vlaneseq
    %v264 = vshrl.u32 %v263, 7
    %v265 = vsub.s32 0, %v264
    %v266 = vrot.slane %v261, %v265
    %v267 = vlaneseq
    %v268 = vshrl.u32 %v267, 7
    %v269 = vsub.s32 1, %v268
    %v270 = vrot.slane %v261, %v269
    %v271 = vlaneseq
    %v272 = vshrl.u32 %v271, 7
    %v273 = vsub.s32 2, %v272
    %v274 = vrot.slane %v261, %v273
    %v275 = vlaneseq
    %v276 = vshrl.u32 %v275, 7
    %v277 = vsub.s32 3, %v276
    %v278 = vrot.slane %v261, %v277
    %v283 = vmul.f32 %v258, %v266
    %v284 = vmul.f32 %v257, %v270
    %v285 = vmul.f32 %v256, %v274
    %v286 = vmul.f32 %v259, %v278
    %v287 = vpack.c.bf16 %v283, %v283
    %v288 = vpack.c.bf16 %v284, %v284
    %v289 = vpack.c.bf16 %v285, %v285
    %v290 = vpack.c.bf16 %v286, %v286
    %291 = vrot.lane.b32.xlu0 %v62, 113
    %v292 = vpop.permute.xlu0 %291
    %293 = vrot.lane.b32.xlu0 %v63, 113
    %v294 = vpop.permute.xlu0 %293
    %295 = vrot.lane.b32.xlu0 %v64, 113
    %v296 = vpop.permute.xlu0 %295
    %297 = vrot.lane.b32.xlu0 %v65, 113
    %v298 = vpop.permute.xlu0 %297
    %vm299 = vcmp.lt.s32.totalorder %v75, 113
    %v300 = vsel %vm299, %v296, %v298
    %v301 = vsel %vm299, %v294, %v296
    %v302 = vsel %vm299, %v292, %v294
    %v303 = vsel %vm299, %v298, %v292
    %s304 = scalar_lea.vmem [#allocation5], 6
    %v305 = vld [vmem:[%s304] ss:$8 sm:$0xf]
    %v307 = vlaneseq
    %v308 = vshrl.u32 %v307, 7
    %v309 = vsub.s32 0, %v308
    %v310 = vrot.slane %v305, %v309
    %v311 = vlaneseq
    %v312 = vshrl.u32 %v311, 7
    %v313 = vsub.s32 1, %v312
    %v314 = vrot.slane %v305, %v313
    %v315 = vlaneseq
    %v316 = vshrl.u32 %v315, 7
    %v317 = vsub.s32 2, %v316
    %v318 = vrot.slane %v305, %v317
    %v319 = vlaneseq
    %v320 = vshrl.u32 %v319, 7
    %v321 = vsub.s32 3, %v320
    %v322 = vrot.slane %v305, %v321
    %v327 = vmul.f32 %v302, %v310
    %v328 = vmul.f32 %v301, %v314
    %v329 = vmul.f32 %v300, %v318
    %v330 = vmul.f32 %v303, %v322
    %v331 = vpack.c.bf16 %v327, %v327
    %v332 = vpack.c.bf16 %v328, %v328
    %v333 = vpack.c.bf16 %v329, %v329
    %v334 = vpack.c.bf16 %v330, %v330
    %335 = vrot.lane.b32.xlu0 %v62, 112
    %v336 = vpop.permute.xlu0 %335
    %337 = vrot.lane.b32.xlu0 %v63, 112
    %v338 = vpop.permute.xlu0 %337
    %339 = vrot.lane.b32.xlu0 %v64, 112
    %v340 = vpop.permute.xlu0 %339
    %341 = vrot.lane.b32.xlu0 %v65, 112
    %v342 = vpop.permute.xlu0 %341
    %vm343 = vcmp.lt.s32.totalorder %v75, 112
    %v344 = vsel %vm343, %v340, %v342
    %v345 = vsel %vm343, %v338, %v340
    %v346 = vsel %vm343, %v336, %v338
    %v347 = vsel %vm343, %v342, %v336
    %s348 = scalar_lea.vmem [#allocation5], 7
    %v349 = vld [vmem:[%s348] ss:$8 sm:$0xf]
    %v351 = vlaneseq
    %v352 = vshrl.u32 %v351, 7
    %v353 = vsub.s32 0, %v352
    %v354 = vrot.slane %v349, %v353
    %v355 = vlaneseq
    %v356 = vshrl.u32 %v355, 7
    %v357 = vsub.s32 1, %v356
    %v358 = vrot.slane %v349, %v357
    %v359 = vlaneseq
    %v360 = vshrl.u32 %v359, 7
    %v361 = vsub.s32 2, %v360
    %v362 = vrot.slane %v349, %v361
    %v363 = vlaneseq
    %v364 = vshrl.u32 %v363, 7
    %v365 = vsub.s32 3, %v364
    %v366 = vrot.slane %v349, %v365
    %v371 = vmul.f32 %v346, %v354
    %v372 = vmul.f32 %v345, %v358
    %v373 = vmul.f32 %v344, %v362
    %v374 = vmul.f32 %v347, %v366
    %v375 = vpack.c.bf16 %v371, %v371
    %v376 = vpack.c.bf16 %v372, %v372
    %v377 = vpack.c.bf16 %v373, %v373
    %v378 = vpack.c.bf16 %v374, %v374
    %379 = vrot.lane.b32.xlu0 %v62, 111
    %v380 = vpop.permute.xlu0 %379
    %381 = vrot.lane.b32.xlu0 %v63, 111
    %v382 = vpop.permute.xlu0 %381
    %383 = vrot.lane.b32.xlu0 %v64, 111
    %v384 = vpop.permute.xlu0 %383
    %385 = vrot.lane.b32.xlu0 %v65, 111
    %v386 = vpop.permute.xlu0 %385
    %vm387 = vcmp.lt.s32.totalorder %v75, 111
    %v388 = vsel %vm387, %v384, %v386
    %v389 = vsel %vm387, %v382, %v384
    %v390 = vsel %vm387, %v380, %v382
    %v391 = vsel %vm387, %v386, %v380
    %s392 = scalar_lea.vmem [#allocation5], 32
    %v393 = vld [vmem:[%s392] ss:$8 sm:$0xf]
    %v395 = vlaneseq
    %v396 = vshrl.u32 %v395, 7
    %v397 = vsub.s32 0, %v396
    %v398 = vrot.slane %v393, %v397
    %v399 = vlaneseq
    %v400 = vshrl.u32 %v399, 7
    %v401 = vsub.s32 1, %v400
    %v402 = vrot.slane %v393, %v401
    %v403 = vlaneseq
    %v404 = vshrl.u32 %v403, 7
    %v405 = vsub.s32 2, %v404
    %v406 = vrot.slane %v393, %v405
    %v407 = vlaneseq
    %v408 = vshrl.u32 %v407, 7
    %v409 = vsub.s32 3, %v408
    %v410 = vrot.slane %v393, %v409
    %v415 = vmul.f32 %v390, %v398
    %v416 = vmul.f32 %v389, %v402
    %v417 = vmul.f32 %v388, %v406
    %v418 = vmul.f32 %v391, %v410
    %v419 = vpack.c.bf16 %v415, %v415
    %v420 = vpack.c.bf16 %v416, %v416
    %v421 = vpack.c.bf16 %v417, %v417
    %v422 = vpack.c.bf16 %v418, %v418
    %v427 = vrot.slane %v151, 6
    %v428 = vrot.slane %v152, 6
    %v429 = vrot.slane %v153, 6
    %v430 = vrot.slane %v154, 6
    %v435 = vrot.slane %v195, 4
    %v436 = vrot.slane %v196, 4
    %v437 = vrot.slane %v197, 4
    %v438 = vrot.slane %v198, 4
    %v443 = vrot.slane %v239, 2
    %v444 = vrot.slane %v240, 2
    %v445 = vrot.slane %v241, 2
    %v446 = vrot.slane %v242, 2
    %v451 = vrot.slane %v287, 6
    %v452 = vrot.slane %v288, 6
    %v453 = vrot.slane %v289, 6
    %v454 = vrot.slane %v290, 6
    %v459 = vrot.slane %v331, 4
    %v460 = vrot.slane %v332, 4
    %v461 = vrot.slane %v333, 4
    %v462 = vrot.slane %v334, 4
    %v467 = vrot.slane %v375, 2
    %v468 = vrot.slane %v376, 2
    %v469 = vrot.slane %v377, 2
    %v470 = vrot.slane %v378, 2
    %vm471 = vcmask 1041408
    %v474 = vsel %vm471, %v107, %v427
    %v477 = vsel %vm471, %v108, %v428
    %v480 = vsel %vm471, %v109, %v429
    %v483 = vsel %vm471, %v110, %v430
    %vm484 = vcmask 1043456
    %v486 = vsel %vm484, %v474, %v435
    %v488 = vsel %vm484, %v477, %v436
    %v490 = vsel %vm484, %v480, %v437
    %v492 = vsel %vm484, %v483, %v438
    %vm493 = vcmask 1045504
    %v495 = vsel %vm493, %v486, %v443
    %v498 = vsel %vm493, %v488, %v444
    %v501 = vsel %vm493, %v490, %v445
    %v504 = vsel %vm493, %v492, %v446
    %v508 = vsel %vm471, %v243, %v451
    %v511 = vsel %vm471, %v244, %v452
    %v514 = vsel %vm471, %v245, %v453
    %v517 = vsel %vm471, %v246, %v454
    %v519 = vsel %vm484, %v508, %v459
    %v521 = vsel %vm484, %v511, %v460
    %v523 = vsel %vm484, %v514, %v461
    %v525 = vsel %vm484, %v517, %v462
    %v527 = vsel %vm493, %v519, %v467
    %v530 = vsel %vm493, %v521, %v468
    %v533 = vsel %vm493, %v523, %v469
    %v536 = vsel %vm493, %v525, %v470
    %v538 = vld [vmem:[%s2] sm:$0xf]
    %v539 = vld [vmem:[%s3] sm:$0xff]
    %541 = vset.pattern.permute.xlu0 0
    %542 = vperm.xlu0 %541, %v539
    %v543 = vpop.permute.xlu0 %542
    %vm545 = vcmask 293888
    %v547 = vsel %vm545, %v538, 0
    %v550 = vsel %vm471, %v419, 0
    %v553 = vsel %vm471, %v420, 0
    %v556 = vsel %vm471, %v421, 0
    %v559 = vsel %vm471, %v422, 0
    %561 = vmatprep.subr.bf16.mxu0 0
    %562 = vmatpush1.bf16.msra.mxu0 0
    %563 = vmatprep.subr.bf16.mxu0 0
    %564 = vmatpush1.bf16.msra.mxu0 0
    %565 = vmatprep.subr.bf16.mxu0 0
    %566 = vmatpush1.bf16.msra.mxu0 0
    %567 = vmatprep.subr.bf16.mxu0 0
    %568 = vmatpush1.bf16.msra.mxu0 0
    %569 = vmatprep.subr.bf16.mxu0 0
    %570 = vmatpush1.bf16.msra.mxu0 0
    %571 = vmatprep.subr.bf16.mxu0 %v553
    %572 = vmatpush1.bf16.msra.mxu0 %v550
    %573 = vmatprep.subr.bf16.mxu0 %v530
    %574 = vmatpush1.bf16.msra.mxu0 %v527
    %575 = vmatprep.subr.bf16.mxu0 %v498
    %576 = vmatpush1.bf16.msra.mxu0 %v495
    %577 = vmatprep.subr.bf16.mxu0 0
    %578 = vmatpush2.bf16.msra.mxu0 0
    %579 = vmatprep.subr.bf16.mxu0 0
    %580 = vmatpush2.bf16.msra.mxu0 0
    %581 = vmatprep.subr.bf16.mxu0 0
    %582 = vmatpush2.bf16.msra.mxu0 0
    %583 = vmatprep.subr.bf16.mxu0 0
    %584 = vmatpush2.bf16.msra.mxu0 0
    %585 = vmatprep.subr.bf16.mxu0 0
    %586 = vmatpush2.bf16.msra.mxu0 0
    %587 = vmatprep.subr.bf16.mxu0 0
    %588 = vmatpush2.bf16.msra.mxu0 0
    %589 = vmatprep.subr.bf16.mxu0 0
    %590 = vmatpush2.bf16.msra.mxu0 0
    %591 = vmatprep.subr.bf16.mxu0 0
    %592 = vmatpush2.bf16.msra.mxu0 0
    %593 = vmatprep.mubr.bf16.mxu0 0
    %594 = vmatmul.mubr.bf16.gmra.mxu0 %v547
    %v595 = vpop.f32.mrf.mxu0
    %v596 = vadd.f32 %v543, %v595
    %v597 = vpop.f32.mrf.mxu0
    %v598 = vadd.f32 %v543, %v597
    %v599 = vpop.f32.mrf.mxu0
    %v600 = vpop.f32.mrf.mxu0
    %601 = vdwg.mxu0
    %602 = vmatprep.subr.bf16.mxu0 0
    %603 = vmatpush1.bf16.msra.mxu0 0
    %604 = vmatprep.subr.bf16.mxu0 0
    %605 = vmatpush1.bf16.msra.mxu0 0
    %606 = vmatprep.subr.bf16.mxu0 0
    %607 = vmatpush1.bf16.msra.mxu0 0
    %608 = vmatprep.subr.bf16.mxu0 0
    %609 = vmatpush1.bf16.msra.mxu0 0
    %610 = vmatprep.subr.bf16.mxu0 0
    %611 = vmatpush1.bf16.msra.mxu0 0
    %612 = vmatprep.subr.bf16.mxu0 %v559
    %613 = vmatpush1.bf16.msra.mxu0 %v556
    %614 = vmatprep.subr.bf16.mxu0 %v536
    %615 = vmatpush1.bf16.msra.mxu0 %v533
    %616 = vmatprep.subr.bf16.mxu0 %v504
    %617 = vmatpush1.bf16.msra.mxu0 %v501
    %618 = vmatprep.subr.bf16.mxu0 0
    %619 = vmatpush2.bf16.msra.mxu0 0
    %620 = vmatprep.subr.bf16.mxu0 0
    %621 = vmatpush2.bf16.msra.mxu0 0
    %622 = vmatprep.subr.bf16.mxu0 0
    %623 = vmatpush2.bf16.msra.mxu0 0
    %624 = vmatprep.subr.bf16.mxu0 0
    %625 = vmatpush2.bf16.msra.mxu0 0
    %626 = vmatprep.subr.bf16.mxu0 0
    %627 = vmatpush2.bf16.msra.mxu0 0
    %628 = vmatprep.subr.bf16.mxu0 0
    %629 = vmatpush2.bf16.msra.mxu0 0
    %630 = vmatprep.subr.bf16.mxu0 0
    %631 = vmatpush2.bf16.msra.mxu0 0
    %632 = vmatprep.subr.bf16.mxu0 0
    %633 = vmatpush2.bf16.msra.mxu0 0
    %634 = vmatprep.mubr.bf16.mxu0 0
    %635 = vmatmul.mubr.bf16.gmra.mxu0 %v547
    %v636 = vpop.f32.mrf.mxu0
    %v637 = vadd.f32 %v543, %v636
    %v638 = vpop.f32.mrf.mxu0
    %v639 = vadd.f32 %v543, %v638
    %v640 = vpop.f32.mrf.mxu0
    %v641 = vpop.f32.mrf.mxu0
    %642 = vdwg.mxu0
    %v643 = vmax.f32 %v596, 0.0
    %v644 = vmax.f32 %v598, 0.0
    %v645 = vmax.f32 %v637, 0.0
    %v646 = vmax.f32 %v639, 0.0
    %v647 = vld [vmem:[%s4] sm:$0x3]
    %v648 = vpack.c.bf16 %v643, %v643
    %v649 = vpack.c.bf16 %v644, %v644
    %v650 = vpack.c.bf16 %v645, %v645
    %v651 = vpack.c.bf16 %v646, %v646
    %v652 = vld [vmem:[%s5] sm:$0xf]
    %654 = vset.pattern.permute.xlu0 0
    %655 = vperm.xlu0 %654, %v652
    %v656 = vpop.permute.xlu0 %655
    %vm658 = vcmask 64512
    %v660 = vsel %vm658, %v647, 0
    %v663 = vsel %vm484, %v648, 0
    %v666 = vsel %vm484, %v649, 0
    %v669 = vsel %vm484, %v650, 0
    %v672 = vsel %vm484, %v651, 0
    %674 = vmatprep.subr.bf16.mxu0 0
    %675 = vmatpush1.bf16.msra.mxu0 0
    %676 = vmatprep.subr.bf16.mxu0 0
    %677 = vmatpush1.bf16.msra.mxu0 0
    %678 = vmatprep.subr.bf16.mxu0 0
    %679 = vmatpush1.bf16.msra.mxu0 0
    %680 = vmatprep.subr.bf16.mxu0 0
    %681 = vmatpush1.bf16.msra.mxu0 0
    %682 = vmatprep.subr.bf16.mxu0 0
    %683 = vmatpush1.bf16.msra.mxu0 0
    %684 = vmatprep.subr.bf16.mxu0 0
    %685 = vmatpush1.bf16.msra.mxu0 0
    %686 = vmatprep.subr.bf16.mxu0 0
    %687 = vmatpush1.bf16.msra.mxu0 0
    %688 = vmatprep.subr.bf16.mxu0 %v666
    %689 = vmatpush1.bf16.msra.mxu0 %v663
    %690 = vmatprep.subr.bf16.mxu0 0
    %691 = vmatpush2.bf16.msra.mxu0 0
    %692 = vmatprep.subr.bf16.mxu0 0
    %693 = vmatpush2.bf16.msra.mxu0 0
    %694 = vmatprep.subr.bf16.mxu0 0
    %695 = vmatpush2.bf16.msra.mxu0 0
    %696 = vmatprep.subr.bf16.mxu0 0
    %697 = vmatpush2.bf16.msra.mxu0 0
    %698 = vmatprep.subr.bf16.mxu0 0
    %699 = vmatpush2.bf16.msra.mxu0 0
    %700 = vmatprep.subr.bf16.mxu0 0
    %701 = vmatpush2.bf16.msra.mxu0 0
    %702 = vmatprep.subr.bf16.mxu0 0
    %703 = vmatpush2.bf16.msra.mxu0 0
    %704 = vmatprep.subr.bf16.mxu0 0
    %705 = vmatpush2.bf16.msra.mxu0 0
    %706 = vmatprep.mubr.bf16.mxu0 0
    %707 = vmatmul.mubr.bf16.gmra.mxu0 %v660
    %v708 = vpop.f32.mrf.mxu0
    %v709 = vadd.f32 %v656, %v708
    %v710 = vpop.f32.mrf.mxu0
    %v711 = vadd.f32 %v656, %v710
    %v712 = vpop.f32.mrf.mxu0
    %v713 = vpop.f32.mrf.mxu0
    %714 = vdwg.mxu0
    %715 = vmatprep.subr.bf16.mxu0 0
    %716 = vmatpush1.bf16.msra.mxu0 0
    %717 = vmatprep.subr.bf16.mxu0 0
    %718 = vmatpush1.bf16.msra.mxu0 0
    %719 = vmatprep.subr.bf16.mxu0 0
    %720 = vmatpush1.bf16.msra.mxu0 0
    %721 = vmatprep.subr.bf16.mxu0 0
    %722 = vmatpush1.bf16.msra.mxu0 0
    %723 = vmatprep.subr.bf16.mxu0 0
    %724 = vmatpush1.bf16.msra.mxu0 0
    %725 = vmatprep.subr.bf16.mxu0 0
    %726 = vmatpush1.bf16.msra.mxu0 0
    %727 = vmatprep.subr.bf16.mxu0 0
    %728 = vmatpush1.bf16.msra.mxu0 0
    %729 = vmatprep.subr.bf16.mxu0 %v672
    %730 = vmatpush1.bf16.msra.mxu0 %v669
    %731 = vmatprep.subr.bf16.mxu0 0
    %732 = vmatpush2.bf16.msra.mxu0 0
    %733 = vmatprep.subr.bf16.mxu0 0
    %734 = vmatpush2.bf16.msra.mxu0 0
    %735 = vmatprep.subr.bf16.mxu0 0
    %736 = vmatpush2.bf16.msra.mxu0 0
    %737 = vmatprep.subr.bf16.mxu0 0
    %738 = vmatpush2.bf16.msra.mxu0 0
    %739 = vmatprep.subr.bf16.mxu0 0
    %740 = vmatpush2.bf16.msra.mxu0 0
    %741 = vmatprep.subr.bf16.mxu0 0
    %742 = vmatpush2.bf16.msra.mxu0 0
    %743 = vmatprep.subr.bf16.mxu0 0
    %744 = vmatpush2.bf16.msra.mxu0 0
    %745 = vmatprep.subr.bf16.mxu0 0
    %746 = vmatpush2.bf16.msra.mxu0 0
    %747 = vmatprep.mubr.bf16.mxu0 0
    %748 = vmatmul.mubr.bf16.gmra.mxu0 %v660
    %v749 = vpop.f32.mrf.mxu0
    %v750 = vadd.f32 %v656, %v749
    %v751 = vpop.f32.mrf.mxu0
    %v752 = vadd.f32 %v656, %v751
    %v753 = vpop.f32.mrf.mxu0
    %v754 = vpop.f32.mrf.mxu0
    %755 = vdwg.mxu0
    %v756 = vadd.f32 %v709, %v53
    %v757 = vadd.f32 %v711, %v57
    %v758 = vadd.f32 %v750, %v55
    %v759 = vadd.f32 %v752, %v60
    %v762 = vcombine.low %v756, %v757
    %764 = vst [vmem:[#allocation7] sm:$0xff] %v762
    %v767 = vcombine.low %v758, %v759
    %s769 = scalar_lea.vmem [#allocation7], 8
    %770 = vst [vmem:[%s769] sm:$0xff] %v767
    // Predicated region
    $region34: #{tpu_custom_call.1} parent=1 // pred_check
      _
    $region35: #{tpu_custom_call.1} parent=1 // pred_check_branch
      %772 = sbr.rel (0) target = $region37
    $region36: #{tpu_custom_call.1} parent=1 // pred_region
      %s774 = ssub.s32 256, 256
      %775 = vsyncadd [#allocation4], %s774
      %s776 = sshll.u32 [#allocation7], 4
      %s777 = int_to_ptr.vmem [resolvable:$true] %s776
      %782 = dma.vmem_to_hbm [thread:$0]  %s777, 256, %s6, [#allocation4], 128, 128, 8
    $region37: #{tpu_custom_call.1} parent=1 // pred_fallthru
      _
    // Predicated region
    $region38: #{tpu_custom_call.1} parent=1 // pred_check
      _
    $region39: #{tpu_custom_call.1} parent=1 // pred_check_branch
      %784 = sbr.rel (0) target = $region41
    $region40: #{tpu_custom_call.1} parent=1 // pred_region
      %785 = dma.done [#allocation4], 256
    $region41: #{tpu_custom_call.1} parent=1 // pred_fallthru
      _
    %786 = vsyncpa [#allocation3], 1
    %787 = vsyncpa [#allocation6], 1
    %788 = vsyncpa [#allocation4], 1

</llo_original>
